<compile_context>
chip_gen: v7x
topology: tpu7x:2x2x1
jax: 0.10.0
libtpu: 0.0.40
codegen_flags: <defaults>
</compile_context>

<pallas_src>
import functools

import jax
import jax.numpy as jnp
from jax.experimental import pallas as pl
from jax.experimental.pallas import tpu as pltpu


# ---------------------------------------------------------------------------
# Kernels
# ---------------------------------------------------------------------------
def _se_single_pass_kernel(x_ref, w1t_ref, b1_ref, w2t_ref, b2_ref, o_ref,
                           *, inv_hw, hw, needs_mask):
    # x_ref/o_ref: (Nb, C, HW) -- channels on sublanes, spatial on lanes.
    # w1t_ref: (C, Cmid)  b1_ref: (1, Cmid)  w2t_ref: (Cmid, C)  b2_ref: (1, C)
    xa = x_ref[...]                                            # (Nb, C, HW)
    if needs_mask:
        # HW is not a 128 multiple: zero the physical pad lanes before the
        # squeeze sum so sum * (1/HW) stays exact.
        lane = jax.lax.broadcasted_iota(jnp.int32, xa.shape, 2)
        xa = jnp.where(lane < hw, xa, 0.0)

    # Squeeze: global average pool over the spatial (lane) axis.
    s = jnp.sum(xa, axis=-1) * inv_hw                          # (Nb, C)

    # Excite: fc1 (1x1 conv) + ReLU, fc2 (1x1 conv) + sigmoid, all in f32.
    h = jnp.dot(s, w1t_ref[...], preferred_element_type=jnp.float32) + b1_ref[...]
    h = jnp.maximum(h, 0.0)                                    # (Nb, Cmid)
    g = jnp.dot(h, w2t_ref[...], preferred_element_type=jnp.float32) + b2_ref[...]
    g = jax.nn.sigmoid(g)                                      # (Nb, C)

    # Scale: re-read x (keeps the slab's live range short) and store.
    o_ref[...] = x_ref[...] * g[:, :, None]


def _se_sum_kernel(x_ref, sums_ref, *, hw, hw_tile, needs_mask):
    # Two-pass fallback, pass 1: accumulate per-channel sums over HW tiles.
    # x_ref: (1, C, hw_tile); sums_ref: (1, C, 1), resident across the j axis.
    j = pl.program_id(1)

    @pl.when(j == 0)
    def _():
        sums_ref[...] = jnp.zeros_like(sums_ref)

    xa = x_ref[...]
    if needs_mask:
        lane = jax.lax.broadcasted_iota(jnp.int32, xa.shape, 2) + j * hw_tile
        xa = jnp.where(lane < hw, xa, 0.0)
    sums_ref[...] += jnp.sum(xa, axis=-1, keepdims=True)


def _se_scale_kernel(x_ref, g_ref, o_ref):
    # Two-pass fallback, pass 2: apply the per-channel gate over HW tiles.
    o_ref[...] = x_ref[...] * g_ref[...]


# ---------------------------------------------------------------------------
# Wrapper
# ---------------------------------------------------------------------------
def _round_up(x, m):
    return (x + m - 1) // m * m


def _vmem_cap_bytes():
    # 85% of physical VMEM (leave room for compiler scratch / semaphores).
    try:
        info = pltpu.get_tpu_info()
        cap = getattr(info, "vmem_capacity_bytes", None)
        if cap:
            return int(cap * 0.85)
    except Exception:
        pass
    return 48 << 20  # safe default on every generation (v7x physical is 64 MiB)


@functools.partial(jax.jit, static_argnames=("force_two_pass", "hw_tile_override"))
def se_block(x_nchw, w1, b1, w2, b2, *, force_two_pass=False, hw_tile_override=None):
    """SEBlock forward.

    x_nchw: (N, C, H, W) float32
    w1: (Cmid, C)  -- PyTorch fc1.weight[:, :, 0, 0]
    b1: (Cmid,)    -- fc1.bias
    w2: (C, Cmid)  -- PyTorch fc2.weight[:, :, 0, 0]
    b2: (C,)       -- fc2.bias
    """
    N, C, H, W = x_nchw.shape
    Cmid = w1.shape[0]
    HW = H * W

    # Free reshape (no transpose, no pad): NCHW -> (N, C, H*W).
    x_ncl = x_nchw.reshape(N, C, HW)
    w1t = w1.T                      # (C, Cmid)
    w2t = w2.T                      # (Cmid, C)
    b1r = b1.reshape(1, Cmid)
    b2r = b2.reshape(1, C)

    cp = _round_up(C, 8)
    hwp = _round_up(HW, 128)
    per_image_bytes = cp * hwp * 4                      # physical VMEM per (C, HW) slab
    weight_bytes = 4 * (2 * C * Cmid + C + Cmid)
    slack = 2 << 20
    cap = _vmem_cap_bytes()

    single_pass_ok = (4 * per_image_bytes + weight_bytes + slack) <= cap
    needs_lane_mask = (HW % 128) != 0

    if single_pass_ok and not force_two_pass:
        # ---- Single-pass path: whole (Nb, C, HW) slab per grid step ----
        target_block_bytes = 4 << 20                    # 2-8 MiB sweet spot
        nb = max(1, min(target_block_bytes // per_image_bytes,
                        (cap - weight_bytes - slack) // (4 * per_image_bytes)))
        nb = int(min(nb, N))
        if N >= 2:
            nb = min(nb, -(-N // 2))                    # grid >= 2 steps (v7x: 2 TCs)
        nb = max(nb, 1)
        grid = (pl.cdiv(N, nb),)

        needed = 4 * nb * per_image_bytes + weight_bytes + slack
        vmem_limit = int(min(cap, max(needed, 32 << 20)))

        kernel = functools.partial(
            _se_single_pass_kernel,
            inv_hw=1.0 / HW, hw=HW, needs_mask=needs_lane_mask)

        out_ncl = pl.pallas_call(
            kernel,
            out_shape=jax.ShapeDtypeStruct((N, C, HW), x_ncl.dtype),
            grid_spec=pl.GridSpec(
                grid=grid,
                in_specs=[
                    # Per-step slab; last two dims equal the full (C, HW) extent.
                    pl.BlockSpec((nb, C, HW), lambda i: (i, 0, 0)),
                    pl.BlockSpec((C, Cmid), lambda i: (0, 0)),   # fc1 weight^T (resident)
                    pl.BlockSpec((1, Cmid), lambda i: (0, 0)),   # fc1 bias
                    pl.BlockSpec((Cmid, C), lambda i: (0, 0)),   # fc2 weight^T
                    pl.BlockSpec((1, C), lambda i: (0, 0)),      # fc2 bias
                ],
                out_specs=pl.BlockSpec((nb, C, HW), lambda i: (i, 0, 0)),
            ),
            compiler_params=pltpu.CompilerParams(
                dimension_semantics=("parallel",),
                vmem_limit_bytes=vmem_limit,
            ),
        )(x_ncl, w1t, b1r, w2t, b2r)
        return out_ncl.reshape(N, C, H, W)

    # ---- Two-pass HW-tiled fallback: per-image slab too large for VMEM ----
    # TODO(synk): channel (C) tiling not implemented; assumes (1, C, 128) fits VMEM.
    if hw_tile_override is not None:
        hw_tile = int(hw_tile_override)
    else:
        tile_target = 2 << 20
        hw_tile = (tile_target // (cp * 4)) // 128 * 128
        budget_tile = max(128, ((cap - slack) // (4 * cp * 4)) // 128 * 128)
        hw_tile = max(128, min(hw_tile, budget_tile))
    if hw_tile >= HW:
        hw_tile = HW                                    # full-extent block is legal
    n_hw = pl.cdiv(HW, hw_tile)
    grid = (N, n_hw)

    tile_bytes = cp * _round_up(hw_tile, 128) * 4
    vmem_limit = int(min(cap, max(4 * tile_bytes + slack, 32 << 20)))

    # Pass 1: per-image per-channel sums over HW tiles.
    sum_kernel = functools.partial(
        _se_sum_kernel, hw=HW, hw_tile=hw_tile, needs_mask=(HW % hw_tile != 0))
    sums = pl.pallas_call(
        sum_kernel,
        out_shape=jax.ShapeDtypeStruct((N, C, 1), jnp.float32),
        grid_spec=pl.GridSpec(
            grid=grid,
            in_specs=[pl.BlockSpec((1, C, hw_tile), lambda i, j: (i, 0, j))],
            out_specs=pl.BlockSpec((1, C, 1), lambda i, j: (i, 0, 0)),
        ),
        compiler_params=pltpu.CompilerParams(
            dimension_semantics=("parallel", "arbitrary"),
            vmem_limit_bytes=vmem_limit,
        ),
    )(x_ncl)

    # Excite on the tiny (N, C) pooled tensor: negligible, keep in plain JAX.
    means = sums[..., 0] * (1.0 / HW)                   # (N, C)
    h = jnp.maximum(means @ w1t + b1r, 0.0)             # (N, Cmid)
    gates = jax.nn.sigmoid(h @ w2t + b2r)[..., None]    # (N, C, 1)

    # Pass 2: apply the gate over HW tiles.
    out_ncl = pl.pallas_call(
        _se_scale_kernel,
        out_shape=jax.ShapeDtypeStruct((N, C, HW), x_ncl.dtype),
        grid_spec=pl.GridSpec(
            grid=grid,
            in_specs=[
                pl.BlockSpec((1, C, hw_tile), lambda i, j: (i, 0, j)),
                pl.BlockSpec((1, C, 1), lambda i, j: (i, 0, 0)),
            ],
            out_specs=pl.BlockSpec((1, C, hw_tile), lambda i, j: (i, 0, j)),
        ),
        compiler_params=pltpu.CompilerParams(
            dimension_semantics=("parallel", "parallel"),
            vmem_limit_bytes=vmem_limit,
        ),
    )(x_ncl, gates)
    return out_ncl.reshape(N, C, H, W)


# ---------------------------------------------------------------------------
# Reference + test
# ---------------------------------------------------------------------------
def _reference(x, w1, b1, w2, b2):
    # Pure-JAX reference matching the PyTorch semantics (NCHW, PyTorch layout).
    scale = jnp.mean(x, axis=(2, 3))                    # (N, C)
    h = jnp.maximum(scale @ w1.T + b1, 0.0)             # (N, Cmid)
    g = jax.nn.sigmoid(h @ w2.T + b2)                   # (N, C)
    return x * g[:, :, None, None]


def _make_inputs(key, n, c, h, w, reduction):
    cmid = max(c // reduction, 1)
    kx, k1, k2, k3, k4 = jax.random.split(key, 5)
    x = jax.random.normal(kx, (n, c, h, w), dtype=jnp.float32)
    w1 = jax.random.normal(k1, (cmid, c), dtype=jnp.float32) * 0.1
    b1 = jax.random.normal(k2, (cmid,), dtype=jnp.float32) * 0.1
    w2 = jax.random.normal(k3, (c, cmid), dtype=jnp.float32) * 0.1
    b2 = jax.random.normal(k4, (c,), dtype=jnp.float32) * 0.1
    return x, w1, b1, w2, b2


if __name__ == "__main__":
    key = jax.random.PRNGKey(0)
    ka, kb, kc = jax.random.split(key, 3)

    # 1) Aligned spatial (HW = 256), single-pass path.
    x, w1, b1, w2, b2 = _make_inputs(ka, 2, 4, 16, 16, 16)
    out = jax.block_until_ready(se_block(x, w1, b1, w2, b2))
    ref = _reference(x, w1, b1, w2, b2)
    assert out.shape == x.shape
    assert jnp.allclose(out, ref, atol=1e-5, rtol=1e-5), "single-pass (aligned) mismatch"

    # 2) Unaligned spatial (HW = 25) + ragged batch blocking, single-pass path.
    x, w1, b1, w2, b2 = _make_inputs(kb, 3, 8, 5, 5, 4)
    out = jax.block_until_ready(se_block(x, w1, b1, w2, b2))
    ref = _reference(x, w1, b1, w2, b2)
    assert jnp.allclose(out, ref, atol=1e-5, rtol=1e-5), "single-pass (unaligned) mismatch"

    # 3) Two-pass HW-tiled fallback (forced; HW = 144 split into 128 + masked tail).
    x, w1, b1, w2, b2 = _make_inputs(kc, 2, 4, 12, 12, 16)
    out = jax.block_until_ready(
        se_block(x, w1, b1, w2, b2, force_two_pass=True, hw_tile_override=128))
    ref = _reference(x, w1, b1, w2, b2)
    assert jnp.allclose(out, ref, atol=1e-5, rtol=1e-5), "two-pass fallback mismatch"

    print("KERNEL_OK")
</pallas_src>

<mosaic_0001>
module attributes {stable_mosaic.version = 11 : i64} {
  func.func @_se_single_pass_kernel(%arg0: i32, %arg1: memref<1x4x256xf32, #tpu.memory_space<vmem>>, %arg2: memref<4x1xf32, #tpu.memory_space<vmem>>, %arg3: memref<1x1xf32, #tpu.memory_space<vmem>>, %arg4: memref<1x4xf32, #tpu.memory_space<vmem>>, %arg5: memref<1x4xf32, #tpu.memory_space<vmem>>, %arg6: memref<1x4x256xf32, #tpu.memory_space<vmem>>) attributes {dimension_semantics = [#tpu.dimension_semantics<parallel>], iteration_bounds = array<i64: 2>, scalar_prefetch = 0 : i64, scratch_operands = 0 : i64, tpu.core_type = #tpu.core_type<tc>, window_params = [{transform_indices = @transform_0, window_bounds = array<i64: 1, 4, 256>}, {pipeline_mode = #tpu.pipeline_mode<synchronous>, transform_indices = @transform_1, window_bounds = array<i64: 4, 1>}, {pipeline_mode = #tpu.pipeline_mode<synchronous>, transform_indices = @transform_2, window_bounds = array<i64: 1, 1>}, {pipeline_mode = #tpu.pipeline_mode<synchronous>, transform_indices = @transform_3, window_bounds = array<i64: 1, 4>}, {pipeline_mode = #tpu.pipeline_mode<synchronous>, transform_indices = @transform_4, window_bounds = array<i64: 1, 4>}, {transform_indices = @transform_5, window_bounds = array<i64: 1, 4, 256>}]} {
    %c0 = arith.constant 0 : index
    %c0_0 = arith.constant 0 : index
    %c0_1 = arith.constant 0 : index
    %0 = vector.load %arg1[%c0, %c0_0, %c0_1] : memref<1x4x256xf32, #tpu.memory_space<vmem>>, vector<1x4x256xf32>
    %cst = arith.constant dense<0.000000e+00> : vector<1x4xf32>
    %1 = vector.multi_reduction <add>, %0, %cst [2] : vector<1x4x256xf32> to vector<1x4xf32>
    %cst_2 = arith.constant 3.906250e-03 : f32
    %2 = vector.broadcast %cst_2 : f32 to vector<1x4xf32>
    %3 = arith.mulf %1, %2 : vector<1x4xf32>
    %c0_3 = arith.constant 0 : index
    %c0_4 = arith.constant 0 : index
    %4 = vector.load %arg2[%c0_3, %c0_4] : memref<4x1xf32, #tpu.memory_space<vmem>>, vector<4x1xf32>
    %cst_5 = arith.constant dense<0.000000e+00> : vector<1x1xf32>
    %5 = tpu.matmul %3, %4, %cst_5 {dimension_numbers = #tpu.dot_dimension_numbers<[1], [0], [0], [1], [0, 0, 1, 1], [], []>} : vector<1x4xf32>, vector<4x1xf32>, vector<1x1xf32> -> vector<1x1xf32>
    %c0_6 = arith.constant 0 : index
    %c0_7 = arith.constant 0 : index
    %6 = vector.load %arg3[%c0_6, %c0_7] : memref<1x1xf32, #tpu.memory_space<vmem>>, vector<1x1xf32>
    %7 = arith.addf %5, %6 : vector<1x1xf32>
    %cst_8 = arith.constant 0.000000e+00 : f32
    %8 = vector.broadcast %cst_8 : f32 to vector<1x1xf32>
    %9 = arith.maximumf %7, %8 : vector<1x1xf32>
    %c0_9 = arith.constant 0 : index
    %c0_10 = arith.constant 0 : index
    %10 = vector.load %arg4[%c0_9, %c0_10] : memref<1x4xf32, #tpu.memory_space<vmem>>, vector<1x4xf32>
    %cst_11 = arith.constant dense<0.000000e+00> : vector<1x4xf32>
    %11 = tpu.matmul %9, %10, %cst_11 {dimension_numbers = #tpu.dot_dimension_numbers<[1], [0], [0], [1], [0, 0, 1, 1], [], []>} : vector<1x1xf32>, vector<1x4xf32>, vector<1x4xf32> -> vector<1x4xf32>
    %c0_12 = arith.constant 0 : index
    %c0_13 = arith.constant 0 : index
    %12 = vector.load %arg5[%c0_12, %c0_13] : memref<1x4xf32, #tpu.memory_space<vmem>>, vector<1x4xf32>
    %13 = arith.addf %11, %12 : vector<1x4xf32>
    %14 = arith.negf %13 : vector<1x4xf32>
    %15 = math.exp %14 : vector<1x4xf32>
    %cst_14 = arith.constant 1.000000e+00 : f32
    %16 = vector.broadcast %cst_14 : f32 to vector<1x4xf32>
    %17 = arith.addf %16, %15 : vector<1x4xf32>
    %18 = arith.divf %16, %17 : vector<1x4xf32>
    %c0_15 = arith.constant 0 : index
    %c0_16 = arith.constant 0 : index
    %c0_17 = arith.constant 0 : index
    %19 = vector.load %arg1[%c0_15, %c0_16, %c0_17] : memref<1x4x256xf32, #tpu.memory_space<vmem>>, vector<1x4x256xf32>
    %20 = vector.shape_cast %18 : vector<1x4xf32> to vector<1x4x1xf32>
    %21 = vector.broadcast %20 : vector<1x4x1xf32> to vector<1x4x256xf32>
    %22 = arith.mulf %19, %21 : vector<1x4x256xf32>
    %c0_18 = arith.constant 0 : index
    %c0_19 = arith.constant 0 : index
    %c0_20 = arith.constant 0 : index
    %23 = vector.load %arg6[%c0_18, %c0_19, %c0_20] : memref<1x4x256xf32, #tpu.memory_space<vmem>>, vector<1x4x256xf32>
    tpu.vector_store %arg6[%c0_18, %c0_19, %c0_20], %22 {strides = array<i32>} : memref<1x4x256xf32, #tpu.memory_space<vmem>>, vector<1x4x256xf32>,
    return
  }
  func.func @transform_0(%arg0: i32) -> (i32, i32, i32) {
    %c0_i32 = arith.constant 0 : i32
    %c0_i32_0 = arith.constant 0 : i32
    %c0_i32_1 = arith.constant 0 : i32
    return %arg0, %c0_i32, %c0_i32_0 : i32, i32, i32
  }
  func.func @transform_1(%arg0: i32) -> (i32, i32) {
    %c0_i32 = arith.constant 0 : i32
    %c0_i32_0 = arith.constant 0 : i32
    %c0_i32_1 = arith.constant 0 : i32
    return %c0_i32, %c0_i32_0 : i32, i32
  }
  func.func @transform_2(%arg0: i32) -> (i32, i32) {
    %c0_i32 = arith.constant 0 : i32
    %c0_i32_0 = arith.constant 0 : i32
    %c0_i32_1 = arith.constant 0 : i32
    return %c0_i32, %c0_i32_0 : i32, i32
  }
  func.func @transform_3(%arg0: i32) -> (i32, i32) {
    %c0_i32 = arith.constant 0 : i32
    %c0_i32_0 = arith.constant 0 : i32
    %c0_i32_1 = arith.constant 0 : i32
    return %c0_i32, %c0_i32_0 : i32, i32
  }
  func.func @transform_4(%arg0: i32) -> (i32, i32) {
    %c0_i32 = arith.constant 0 : i32
    %c0_i32_0 = arith.constant 0 : i32
    %c0_i32_1 = arith.constant 0 : i32
    return %c0_i32, %c0_i32_0 : i32, i32
  }
  func.func @transform_5(%arg0: i32) -> (i32, i32, i32) {
    %c0_i32 = arith.constant 0 : i32
    %c0_i32_0 = arith.constant 0 : i32
    %c0_i32_1 = arith.constant 0 : i32
    return %arg0, %c0_i32, %c0_i32_0 : i32, i32, i32
  }
}

</mosaic_0001>

<llo_original>
// kernel: se_block.1
$region0: #{se_block.1}
  #allocation0 [shape = 'u32[]', space=smem, size = 0x4, offset = 0x4, fixed_abs, tag = 'smem constant byte address 0x4 - core index']
  #allocation1 [shape = 'u32[144,128]{1,0:T(1,128)}', space=vmem, size = 0x12000, scoped, tag = 'internal scratch']
  #allocation2 [shape = 'f32[1,1]{1,0:T(1,128)S(1)}', space=vmem, size = 0x200, scoped, tag = 'scoped memory for se_block.1']
  %s0 = inlined_call_operand.vmem [shape: f32[2,4,256], index: 0, kind: input, shape index: {}]
  %s1 = inlined_call_operand.vmem [shape: f32[4,1], index: 1, kind: input, shape index: {}]
  %s2 = inlined_call_operand.<no memory space> [shape: f32[1,1], index: 2, kind: input, shape index: {}]
  %s3 = inlined_call_operand.vmem [shape: f32[1,4], index: 3, kind: input, shape index: {}]
  %s4 = inlined_call_operand.vmem [shape: f32[1,4], index: 4, kind: input, shape index: {}]
  %s5 = inlined_call_operand.vmem [shape: f32[2,4,256], index: 5, kind: output, shape index: {}]
  %s6 = sld [smem:[#allocation0]]
  $region53: #{se_block.1} parent=0
    _
  %s8 = ssub.s32 1, %s6
  %s9 = scalar_select 0, %s8, %s6
  %v10 = vstv %s2
  %11 = vst [vmem:[#allocation2] sm:$0x1] %v10
  loop: start=0, step=1, limit=4
  $region2: #{se_block.1} parent=0 // loop_pre_header
    _
  $region3: #{se_block.1} parent=0 // loop_header
    %s13 = sphi 0, %s17
    %p14 = scmp.ge.s32.totalorder %s13, 4
    %s23 = sphi 0, %s25
    %s26 = sphi 0, %s23
    %s27 = sphi 0, %s26
    %s43 = sphi 0, %s27
    %s47 = sphi 0, %s47
    %s49 = sphi 0, %s47
    %s50 = sphi 0, %s49
    %s64 = sphi 0, %s50
    %s68 = sphi 0, %s68
    %s70 = sphi 0, %s68
    %s71 = sphi 0, %s70
    %s85 = sphi 0, %s71
    %s89 = sphi 0, %s89
    %s91 = sphi 0, %s89
    %s92 = sphi 0, %s91
    %s106 = sphi 0, %s92
    %s110 = sphi 0, %s110
    %s112 = sphi 0, %s110
    %s113 = sphi 0, %s112
    %s127 = sphi 0, %s113
    %s133 = sphi 0, %s135
    %s136 = sphi 0, %s133
    %s137 = sphi 0, %s136
    %s153 = sphi 0, %s137
  $region4: #{se_block.1} parent=0 // loop_header_branch
    %16 = sbr.rel (%p14) target = $region8
  $region5: #{se_block.1} parent=0 // loop_body
    %s18 = ssub.s32 %s13, 1
    %s19 = ssub.s32 %s13, 2
    %s20 = sadd.s32 %s13, 1
    %s21 = ssub.s32 %s13, %s20
    %p22 = scmp.eq.s32.totalorder %s21, 0
    %s24 = sadd.s32 %s23, 1
    %s25 = scalar_select %p22, %s23, %s24
    %p28 = pneg %p22
    %p29 = scmp.eq.s32.totalorder %s13, 1
    %p30 = por %p28, %p29
    %p31 = scmp.ne.s32.totalorder %s23, %s26
    %p32 = scmp.eq.s32.totalorder %s13, 0
    %p33 = por %p31, %p32
    %p34 = scmp.ne.s32.totalorder %s23, %s26
    %p35 = scmp.eq.s32.totalorder %s18, 1
    %p36 = por %p34, %p35
    %p37 = scmp.ne.s32.totalorder %s26, %s27
    %p38 = scmp.eq.s32.totalorder %s18, 0
    %p39 = por %p37, %p38
    %p40 = scmp.ne.s32.totalorder %s26, %s27
    %p41 = scmp.eq.s32.totalorder %s19, 1
    %p42 = por %p40, %p41
    %p44 = scmp.ne.s32.totalorder %s27, %s43
    %p45 = scmp.eq.s32.totalorder %s19, 0
    %p46 = por %p44, %p45
    %s48 = sadd.s32 %s47, 1
    %p51 = scmp.eq.s32.totalorder %s13, 1
    %p52 = scmp.ne.s32.totalorder %s47, %s49
    %p53 = scmp.eq.s32.totalorder %s13, 0
    %p54 = por %p52, %p53
    %p55 = scmp.ne.s32.totalorder %s47, %s49
    %p56 = scmp.eq.s32.totalorder %s18, 1
    %p57 = por %p55, %p56
    %p58 = scmp.ne.s32.totalorder %s49, %s50
    %p59 = scmp.eq.s32.totalorder %s18, 0
    %p60 = por %p58, %p59
    %p61 = scmp.ne.s32.totalorder %s49, %s50
    %p62 = scmp.eq.s32.totalorder %s19, 1
    %p63 = por %p61, %p62
    %p65 = scmp.ne.s32.totalorder %s50, %s64
    %p66 = scmp.eq.s32.totalorder %s19, 0
    %p67 = por %p65, %p66
    %s69 = sadd.s32 %s68, 1
    %p72 = scmp.eq.s32.totalorder %s13, 1
    %p73 = scmp.ne.s32.totalorder %s68, %s70
    %p74 = scmp.eq.s32.totalorder %s13, 0
    %p75 = por %p73, %p74
    %p76 = scmp.ne.s32.totalorder %s68, %s70
    %p77 = scmp.eq.s32.totalorder %s18, 1
    %p78 = por %p76, %p77
    %p79 = scmp.ne.s32.totalorder %s70, %s71
    %p80 = scmp.eq.s32.totalorder %s18, 0
    %p81 = por %p79, %p80
    %p82 = scmp.ne.s32.totalorder %s70, %s71
    %p83 = scmp.eq.s32.totalorder %s19, 1
    %p84 = por %p82, %p83
    %p86 = scmp.ne.s32.totalorder %s71, %s85
    %p87 = scmp.eq.s32.totalorder %s19, 0
    %p88 = por %p86, %p87
    %s90 = sadd.s32 %s89, 1
    %p93 = scmp.eq.s32.totalorder %s13, 1
    %p94 = scmp.ne.s32.totalorder %s89, %s91
    %p95 = scmp.eq.s32.totalorder %s13, 0
    %p96 = por %p94, %p95
    %p97 = scmp.ne.s32.totalorder %s89, %s91
    %p98 = scmp.eq.s32.totalorder %s18, 1
    %p99 = por %p97, %p98
    %p100 = scmp.ne.s32.totalorder %s91, %s92
    %p101 = scmp.eq.s32.totalorder %s18, 0
    %p102 = por %p100, %p101
    %p103 = scmp.ne.s32.totalorder %s91, %s92
    %p104 = scmp.eq.s32.totalorder %s19, 1
    %p105 = por %p103, %p104
    %p107 = scmp.ne.s32.totalorder %s92, %s106
    %p108 = scmp.eq.s32.totalorder %s19, 0
    %p109 = por %p107, %p108
    %s111 = sadd.s32 %s110, 1
    %p114 = scmp.eq.s32.totalorder %s13, 1
    %p115 = scmp.ne.s32.totalorder %s110, %s112
    %p116 = scmp.eq.s32.totalorder %s13, 0
    %p117 = por %p115, %p116
    %p118 = scmp.ne.s32.totalorder %s110, %s112
    %p119 = scmp.eq.s32.totalorder %s18, 1
    %p120 = por %p118, %p119
    %p121 = scmp.ne.s32.totalorder %s112, %s113
    %p122 = scmp.eq.s32.totalorder %s18, 0
    %p123 = por %p121, %p122
    %p124 = scmp.ne.s32.totalorder %s112, %s113
    %p125 = scmp.eq.s32.totalorder %s19, 1
    %p126 = por %p124, %p125
    %p128 = scmp.ne.s32.totalorder %s113, %s127
    %p129 = scmp.eq.s32.totalorder %s19, 0
    %p130 = por %p128, %p129
    %s131 = ssub.s32 %s13, %s20
    %p132 = scmp.eq.s32.totalorder %s131, 0
    %s134 = sadd.s32 %s133, 1
    %s135 = scalar_select %p132, %s133, %s134
    %p138 = pneg %p132
    %p139 = scmp.eq.s32.totalorder %s13, 1
    %p140 = por %p138, %p139
    %p141 = scmp.ne.s32.totalorder %s133, %s136
    %p142 = scmp.eq.s32.totalorder %s13, 0
    %p143 = por %p141, %p142
    %p144 = scmp.ne.s32.totalorder %s133, %s136
    %p145 = scmp.eq.s32.totalorder %s18, 1
    %p146 = por %p144, %p145
    %p147 = scmp.ne.s32.totalorder %s136, %s137
    %p148 = scmp.eq.s32.totalorder %s18, 0
    %p149 = por %p147, %p148
    %p150 = scmp.ne.s32.totalorder %s136, %s137
    %p151 = scmp.eq.s32.totalorder %s19, 1
    %p152 = por %p150, %p151
    %p154 = scmp.ne.s32.totalorder %s137, %s153
    %p155 = scmp.eq.s32.totalorder %s19, 0
    %p156 = por %p154, %p155
    %p157 = scmp.le.s32.totalorder 1, %s13
    %p158 = scmp.lt.s32.totalorder %s13, 3
    %p159 = pnand %p157, %p158
    %p160 = pneg %p159
    // Predicated region
    $region9: #{se_block.1} parent=5 // pred_check
      _
    $region10: #{se_block.1} parent=5 // pred_check_branch
      %162 = sbr.rel (%p159) target = $region12
    $region11: #{se_block.1} parent=5 // pred_region
      %s163 = ssub.s32 %s13, 1
      // Predicated region
      $region13: #{se_block.1} parent=11 // pred_check
        %p164 = pneg %p60
      $region14: #{se_block.1} parent=11 // pred_check_branch
        %166 = sbr.rel (%p164) target = $region16
      $region15: #{se_block.1} parent=11 // pred_region
        _
      $region16: #{se_block.1} parent=11 // pred_fallthru
        _
      // Predicated region
      $region17: #{se_block.1} parent=11 // pred_check
        %p167 = pneg %p81
      $region18: #{se_block.1} parent=11 // pred_check_branch
        %169 = sbr.rel (%p167) target = $region20
      $region19: #{se_block.1} parent=11 // pred_region
        _
      $region20: #{se_block.1} parent=11 // pred_fallthru
        _
      // Predicated region
      $region21: #{se_block.1} parent=11 // pred_check
        %p170 = pneg %p102
      $region22: #{se_block.1} parent=11 // pred_check_branch
        %172 = sbr.rel (%p170) target = $region24
      $region23: #{se_block.1} parent=11 // pred_region
        _
      $region24: #{se_block.1} parent=11 // pred_fallthru
        _
      // Predicated region
      $region25: #{se_block.1} parent=11 // pred_check
        %p173 = pneg %p123
      $region26: #{se_block.1} parent=11 // pred_check_branch
        %175 = sbr.rel (%p173) target = $region28
      $region27: #{se_block.1} parent=11 // pred_region
        _
      $region28: #{se_block.1} parent=11 // pred_fallthru
        _
    $region12: #{se_block.1} parent=5 // pred_fallthru
      _
    %p176 = scmp.lt.s32.totalorder %s13, 2
    // Predicated region
    $region29: #{se_block.1} parent=5 // pred_check
      %p177 = pneg %p176
    $region30: #{se_block.1} parent=5 // pred_check_branch
      %179 = sbr.rel (%p177) target = $region32
    $region31: #{se_block.1} parent=5 // pred_region
      // Predicated region
      $region33: #{se_block.1} parent=31 // pred_check
        %p180 = pneg %p33
      $region34: #{se_block.1} parent=31 // pred_check_branch
        %182 = sbr.rel (%p180) target = $region36
      $region35: #{se_block.1} parent=31 // pred_region
        %p183 = scmp.lt.s32.totalorder %s13, 1
        %s184 = scalar_select %p183, %s13, 1
        %s185 = smul.addr %s184, 2
        %s186 = smul.addr %s185, 4
        %s187 = scalar_lea.vmem %s0, %s186
      $region36: #{se_block.1} parent=31 // pred_fallthru
        _
    $region32: #{se_block.1} parent=5 // pred_fallthru
      _
    %p188 = scmp.le.s32.totalorder 1, %s13
    %p189 = scmp.lt.s32.totalorder %s13, 3
    %p190 = pnand %p188, %p189
    %p191 = pneg %p190
    // Predicated region
    $region37: #{se_block.1} parent=5 // pred_check
      _
    $region38: #{se_block.1} parent=5 // pred_check_branch
      %193 = sbr.rel (%p190) target = $region40
    $region39: #{se_block.1} parent=5 // pred_region
      %s194 = ssub.s32 %s13, 1
      %p195 = scmp.lt.s32.totalorder %s18, 1
      %s196 = scalar_select %p195, %s18, 1
      %s197 = smul.addr %s196, 2
      %s198 = smul.addr %s197, 4
      %s199 = scalar_lea.vmem %s0, %s198
      %p200 = pneg %p39
      %p201 = pneg %p36
      %p202 = pneg %p60
      %p203 = pneg %p57
      %p204 = pneg %p81
      %p205 = pneg %p78
      %p206 = pneg %p102
      %p207 = pneg %p99
      %p208 = pneg %p123
      %p209 = pneg %p120
      %p210 = pneg %p149
      %p211 = pneg %p146
      %p212 = scmp.lt.s32.totalorder %s18, 1
      %s213 = scalar_select %p212, %s18, 1
      %s214 = smul.addr %s213, 2
      %s215 = smul.addr %s214, 4
      %s216 = scalar_lea.vmem %s5, %s215
      %p217 = scmp.lt.s32.totalorder %s18, 1
      %s218 = scalar_select %p217, %s18, 1
      %s219 = smul.addr %s218, 2
      %s220 = smul.addr %s219, 4
      %s221 = scalar_lea.vmem %s0, %s220
      %p222 = scmp.lt.s32.totalorder %s18, 1
      %s223 = scalar_select %p222, %s18, 1
      %s224 = smul.addr %s223, 2
      %s225 = smul.addr %s224, 4
      %s226 = scalar_lea.vmem %s5, %s225
      %v227 = vld [vmem:[%s221] sm:$0xff]
      %v229 = vcombine.high %v227, %v227
      %vm231 = vcmask 1043456
      %v232 = vsel %vm231, %v227, 0.0
      %v233 = vsel %vm231, %v229, 0.0
      %v234 = vadd.f32 %v232, %v233
      %235 = vadd.xlane.f32.xlu0 %v234
      %v236 = vpop.xlane.xlu0 %235
      %v237 = vmul.f32 %v236, 0.00390625
      %v238 = vld [vmem:[%s1] sm:$0xf]
      %v239 = vld [vmem:[#allocation2] sm:$0x1]
      %v241 = vlaneseq
      %v242 = vand.u32 %v241, 127
      %v243 = vlaneseq
      %v244 = vshrl.u32 %v243, 7
      %v245 = vsub.s32 %v242, %v244
      %v246 = vrot.slane %v237, %v245
      %vm247 = vcmask 31744
      %v248 = vsel %vm247, %v246, 0
      %v251 = vsel %vm231, %v238, 0
      %253 = vmatprep.subr.mxu0 0.0
      %254 = vmatpush1.msra.mxu0 %v251
      %255 = vmatprep.subr.mxu0 0.0
      %256 = vmatpush1.msra.mxu0 0.0
      %257 = vmatprep.subr.mxu0 0.0
      %258 = vmatpush1.msra.mxu0 0.0
      %259 = vmatprep.subr.mxu0 0.0
      %260 = vmatpush1.msra.mxu0 0.0
      %261 = vmatprep.subr.mxu0 0.0
      %262 = vmatpush1.msra.mxu0 0.0
      %263 = vmatprep.subr.mxu0 0.0
      %264 = vmatpush1.msra.mxu0 0.0
      %265 = vmatprep.subr.mxu0 0.0
      %266 = vmatpush1.msra.mxu0 0.0
      %267 = vmatprep.subr.mxu0 0.0
      %268 = vmatpush1.msra.mxu0 0.0
      %269 = vmatprep.subr.mxu0 0.0
      %270 = vmatpush1.msra.mxu0 0.0
      %271 = vmatprep.subr.mxu0 0.0
      %272 = vmatpush1.msra.mxu0 0.0
      %273 = vmatprep.subr.mxu0 0.0
      %274 = vmatpush1.msra.mxu0 0.0
      %275 = vmatprep.subr.mxu0 0.0
      %276 = vmatpush1.msra.mxu0 0.0
      %277 = vmatprep.subr.mxu0 0.0
      %278 = vmatpush1.msra.mxu0 0.0
      %279 = vmatprep.subr.mxu0 0.0
      %280 = vmatpush1.msra.mxu0 0.0
      %281 = vmatprep.subr.mxu0 0.0
      %282 = vmatpush1.msra.mxu0 0.0
      %283 = vmatprep.subr.mxu0 0.0
      %284 = vmatpush1.msra.mxu0 0.0
      %285 = vmatprep.subr.mxu0 0.0
      %286 = vmatpush1.msra.mxu0 0.0
      %287 = vmatprep.subr.mxu0 0.0
      %288 = vmatpush1.msra.mxu0 0.0
      %289 = vmatprep.subr.mxu0 0.0
      %290 = vmatpush1.msra.mxu0 0.0
      %291 = vmatprep.subr.mxu0 0.0
      %292 = vmatpush1.msra.mxu0 0.0
      %293 = vmatprep.subr.mxu0 0.0
      %294 = vmatpush1.msra.mxu0 0.0
      %295 = vmatprep.subr.mxu0 0.0
      %296 = vmatpush1.msra.mxu0 0.0
      %297 = vmatprep.subr.mxu0 0.0
      %298 = vmatpush1.msra.mxu0 0.0
      %299 = vmatprep.subr.mxu0 0.0
      %300 = vmatpush1.msra.mxu0 0.0
      %301 = vmatprep.subr.mxu0 0.0
      %302 = vmatpush1.msra.mxu0 0.0
      %303 = vmatprep.subr.mxu0 0.0
      %304 = vmatpush1.msra.mxu0 0.0
      %305 = vmatprep.subr.mxu0 0.0
      %306 = vmatpush1.msra.mxu0 0.0
      %307 = vmatprep.subr.mxu0 0.0
      %308 = vmatpush1.msra.mxu0 0.0
      %309 = vmatprep.subr.mxu0 0.0
      %310 = vmatpush1.msra.mxu0 0.0
      %311 = vmatprep.subr.mxu0 0.0
      %312 = vmatpush1.msra.mxu0 0.0
      %313 = vmatprep.subr.mxu0 0.0
      %314 = vmatpush1.msra.mxu0 0.0
      %315 = vmatprep.subr.mxu0 0.0
      %316 = vmatpush1.msra.mxu0 0.0
      %317 = vmatprep.mubr.f32.mxu0 0.0
      %318 = vmatmul.mubr.f32.gmra.mrb[0].mxu0 %v248
      %v319 = vpop.f32.mrb[0].mxu0
      %v320 = vadd.f32 %v239, %v319
      %v321 = vpop.f32.mrb[0].mxu0
      %322 = vdwg.mxu0
      %v323 = vmax.f32 %v320, 0.0
      %v324 = vld [vmem:[%s3] sm:$0x1]
      %v325 = vld [vmem:[%s4] sm:$0x1]
      %vm326 = vcmask 7168
      %v328 = vsel %vm326, %v323, 0
      %vm330 = vcmask 1040384
      %v332 = vsel %vm330, %v324, 0
      %334 = vmatprep.subr.mxu0 0.0
      %335 = vmatpush1.msra.mxu0 %v332
      %336 = vmatprep.subr.mxu0 0.0
      %337 = vmatpush1.msra.mxu0 0.0
      %338 = vmatprep.subr.mxu0 0.0
      %339 = vmatpush1.msra.mxu0 0.0
      %340 = vmatprep.subr.mxu0 0.0
      %341 = vmatpush1.msra.mxu0 0.0
      %342 = vmatprep.subr.mxu0 0.0
      %343 = vmatpush1.msra.mxu0 0.0
      %344 = vmatprep.subr.mxu0 0.0
      %345 = vmatpush1.msra.mxu0 0.0
      %346 = vmatprep.subr.mxu0 0.0
      %347 = vmatpush1.msra.mxu0 0.0
      %348 = vmatprep.subr.mxu0 0.0
      %349 = vmatpush1.msra.mxu0 0.0
      %350 = vmatprep.subr.mxu0 0.0
      %351 = vmatpush1.msra.mxu0 0.0
      %352 = vmatprep.subr.mxu0 0.0
      %353 = vmatpush1.msra.mxu0 0.0
      %354 = vmatprep.subr.mxu0 0.0
      %355 = vmatpush1.msra.mxu0 0.0
      %356 = vmatprep.subr.mxu0 0.0
      %357 = vmatpush1.msra.mxu0 0.0
      %358 = vmatprep.subr.mxu0 0.0
      %359 = vmatpush1.msra.mxu0 0.0
      %360 = vmatprep.subr.mxu0 0.0
      %361 = vmatpush1.msra.mxu0 0.0
      %362 = vmatprep.subr.mxu0 0.0
      %363 = vmatpush1.msra.mxu0 0.0
      %364 = vmatprep.subr.mxu0 0.0
      %365 = vmatpush1.msra.mxu0 0.0
      %366 = vmatprep.subr.mxu0 0.0
      %367 = vmatpush1.msra.mxu0 0.0
      %368 = vmatprep.subr.mxu0 0.0
      %369 = vmatpush1.msra.mxu0 0.0
      %370 = vmatprep.subr.mxu0 0.0
      %371 = vmatpush1.msra.mxu0 0.0
      %372 = vmatprep.subr.mxu0 0.0
      %373 = vmatpush1.msra.mxu0 0.0
      %374 = vmatprep.subr.mxu0 0.0
      %375 = vmatpush1.msra.mxu0 0.0
      %376 = vmatprep.subr.mxu0 0.0
      %377 = vmatpush1.msra.mxu0 0.0
      %378 = vmatprep.subr.mxu0 0.0
      %379 = vmatpush1.msra.mxu0 0.0
      %380 = vmatprep.subr.mxu0 0.0
      %381 = vmatpush1.msra.mxu0 0.0
      %382 = vmatprep.subr.mxu0 0.0
      %383 = vmatpush1.msra.mxu0 0.0
      %384 = vmatprep.subr.mxu0 0.0
      %385 = vmatpush1.msra.mxu0 0.0
      %386 = vmatprep.subr.mxu0 0.0
      %387 = vmatpush1.msra.mxu0 0.0
      %388 = vmatprep.subr.mxu0 0.0
      %389 = vmatpush1.msra.mxu0 0.0
      %390 = vmatprep.subr.mxu0 0.0
      %391 = vmatpush1.msra.mxu0 0.0
      %392 = vmatprep.subr.mxu0 0.0
      %393 = vmatpush1.msra.mxu0 0.0
      %394 = vmatprep.subr.mxu0 0.0
      %395 = vmatpush1.msra.mxu0 0.0
      %396 = vmatprep.subr.mxu0 0.0
      %397 = vmatpush1.msra.mxu0 0.0
      %398 = vmatprep.mubr.f32.mxu0 0.0
      %399 = vmatmul.mubr.f32.gmra.mrb[0].mxu0 %v328
      %v400 = vpop.f32.mrb[0].mxu0
      %v401 = vadd.f32 %v325, %v400
      %v402 = vpop.f32.mrb[0].mxu0
      %403 = vdwg.mxu0
      %v404 = vxor.u32 %v401, 2147483648
      %v405 = vmul.f32 %v404, 1.442695
      %v406 = vpow.pop %v405
      %v407 = vadd.f32 %v406, 1.0
      %v408 = vrcp.pop %v407
      %v409 = vmul.f32 1.0, %v408
      %v410 = vlaneseq
      %v411 = vshrl.u32 %v410, 7
      %v412 = vsub.s32 0, %v411
      %v413 = vrot.slane %v409, %v412
      %415 = vbcast.lane.b32.xlu0 %v413, 256
      %v416 = vpop.permute.xlu0 %415
      %v419 = vunpack.c.l.s4 839922192
      %v420 = vunpack.c.0.s8 %v419
      %v421 = vlaneseq
      %v422 = vshrl.u32 %v421, 7
      %v423 = vsub.s32 %v420, %v422
      %v424 = vrot.slane %v416, %v423
      %v426 = vmul.f32 %v227, %v424
      %427 = vst [vmem:[%s226] sm:$0xff] %v426
      %p428 = scmp.lt.s32.totalorder %s18, 1
      %s429 = scalar_select %p428, %s18, 1
      %s430 = smul.addr %s429, 2
      %s431 = smul.addr %s430, 4
      %s432 = scalar_lea.vmem %s5, %s431
      // Predicated region
      $region41: #{se_block.1} parent=39 // pred_check
        %p433 = pneg %p146
      $region42: #{se_block.1} parent=39 // pred_check_branch
        %435 = sbr.rel (%p433) target = $region44
      $region43: #{se_block.1} parent=39 // pred_region
        _
      $region44: #{se_block.1} parent=39 // pred_fallthru
        _
    $region40: #{se_block.1} parent=5 // pred_fallthru
      _
    %p436 = scmp.le.s32.totalorder 2, %s13
    // Predicated region
    $region45: #{se_block.1} parent=5 // pred_check
      %p437 = pneg %p436
    $region46: #{se_block.1} parent=5 // pred_check_branch
      %439 = sbr.rel (%p437) target = $region48
    $region47: #{se_block.1} parent=5 // pred_region
      %s440 = ssub.s32 %s13, 2
      // Predicated region
      $region49: #{se_block.1} parent=47 // pred_check
        %p441 = pneg %p152
      $region50: #{se_block.1} parent=47 // pred_check_branch
        %443 = sbr.rel (%p441) target = $region52
      $region51: #{se_block.1} parent=47 // pred_region
        %p444 = scmp.lt.s32.totalorder %s19, 1
        %s445 = scalar_select %p444, %s19, 1
        %s446 = smul.addr %s445, 2
        %s447 = smul.addr %s446, 4
        %s448 = scalar_lea.vmem %s5, %s447
      $region52: #{se_block.1} parent=47 // pred_fallthru
        _
    $region48: #{se_block.1} parent=5 // pred_fallthru
      _
  $region6: #{se_block.1} parent=0 // loop_footer
    %s17 = sadd.s32 1, %s13
  $region7: #{se_block.1} parent=0 // loop_footer_branch
    %12 = sbr.rel target = $region3
  $region8: #{se_block.1} parent=0 // loop_exit
    _

</llo_original>
